<compile_context>
chip_gen: v5e
topology: v5e:2x2
jax: 0.10.0
libtpu: 0.0.40
codegen_flags: <defaults>
</compile_context>

<pallas_src>
import jax
import jax.numpy as jnp
from jax.experimental import pallas as pl
from jax.experimental.pallas import tpu as pltpu


def span_mean_pool_kernel(h_ref, m_ref, o_ref):
    # h_ref: (BB, L, D) hidden-states tile (input dtype)
    # m_ref: (BB, L)    attention-mask tile (float32, 0/1)
    # o_ref: (BB, D)    pooled output tile
    h = h_ref[...]
    m = m_ref[...]                                        # (BB, L) f32

    # Multiply in the input dtype (mask is exact 0/1), accumulate in f32.
    prod = h * m[:, :, None].astype(h.dtype)              # (BB, L, D)
    masked_sum = jnp.sum(prod, axis=1, dtype=jnp.float32)  # (BB, D) f32

    count = jnp.sum(m, axis=1, keepdims=True)             # (BB, 1) f32
    inv = pl.reciprocal(jnp.maximum(count, 1e-9), approx=True)  # EUP slot
    o_ref[...] = (masked_sum * inv).astype(o_ref.dtype)


def _auto_block_b(B, L, D, itemsize):
    """Pick a batch tile: big enough to amortize per-step overhead, small
    enough that the double-buffered hidden tile stays v7x-safe, and >= 2 grid
    steps when the batch allows (2 TensorCores per v7x chip)."""
    per_copy_budget = 12 * 1024 * 1024            # ~12 MiB hidden tile / copy
    cap = per_copy_budget // max(1, L * D * itemsize)
    cap = min(cap, 512)
    cap = min(cap, pl.cdiv(B, 2))                 # keep the parallel grid >= 2
    cap = max(cap, 1)
    steps = pl.cdiv(B, cap)
    block_b = pl.cdiv(B, steps)                   # distribute evenly (less pad)
    block_b = max(8, ((block_b + 7) // 8) * 8)    # multiple of 8 (sublane tile)
    return block_b


def span_pooling(hidden_states, attention_mask, *, block_b=None):
    """Masked mean pooling: [B, L, D], [B, L] -> [B, D]."""
    B, L, D = hidden_states.shape
    itemsize = jnp.dtype(hidden_states.dtype).itemsize

    if block_b is None:
        block_b = _auto_block_b(B, L, D, itemsize)

    grid_b = pl.cdiv(B, block_b)
    B_pad = grid_b * block_b

    # Keep the mask in f32 (exact 0/1 even if hidden states are low precision).
    mask2 = attention_mask.astype(jnp.float32)

    if B_pad != B:
        pad = B_pad - B
        hidden_states = jnp.pad(hidden_states, ((0, pad), (0, 0), (0, 0)))
        mask2 = jnp.pad(mask2, ((0, pad), (0, 0)))  # padded rows: count 0 -> 0

    # Explicit VMEM sizing: double-buffered tiles + headroom, capped for v7x.
    tile_bytes = block_b * (L * D * itemsize + L * 4 + D * itemsize)
    vmem_limit = min(max(2 * tile_bytes + (4 << 20), 32 << 20), 64 << 20)

    cost = pl.CostEstimate(
        flops=2 * B_pad * L * D,
        transcendentals=B_pad,
        bytes_accessed=(B_pad * L * D * itemsize
                        + B_pad * L * 4
                        + B_pad * D * itemsize),
    )

    out = pl.pallas_call(
        span_mean_pool_kernel,
        out_shape=jax.ShapeDtypeStruct((B_pad, D), hidden_states.dtype),
        grid_spec=pltpu.PrefetchScalarGridSpec(
            num_scalar_prefetch=0,
            grid=(grid_b,),
            in_specs=[
                pl.BlockSpec((block_b, L, D), lambda i: (i, 0, 0)),
                pl.BlockSpec((block_b, L), lambda i: (i, 0)),
            ],
            out_specs=pl.BlockSpec((block_b, D), lambda i: (i, 0)),
        ),
        compiler_params=pltpu.CompilerParams(
            dimension_semantics=("parallel",),
            vmem_limit_bytes=vmem_limit,
        ),
        cost_estimate=cost,
    )(hidden_states, mask2)

    if B_pad != B:
        out = out[:B]
    return out


def span_pooling_ref(hidden_states, attention_mask):
    m = attention_mask[..., None].astype(jnp.float32)
    h = hidden_states.astype(jnp.float32)
    return (jnp.sum(h * m, axis=1) /
            jnp.maximum(jnp.sum(m, axis=1), 1e-9)).astype(hidden_states.dtype)


if __name__ == "__main__":
    key = jax.random.PRNGKey(0)
    k_h, k_len, k_h2, k_len2 = jax.random.split(key, 4)

    # Shapes from the module docstring: [16, 9, 768] / [16, 9].
    B, L, D = 16, 9, 768
    hidden_states = jax.random.normal(k_h, (B, L, D), dtype=jnp.float32)
    span_lengths = jax.random.randint(k_len, (B,), minval=1, maxval=L + 1)
    attention_mask = (jnp.arange(L)[None, :] < span_lengths[:, None]).astype(
        jnp.float32
    )

    pooled = jax.block_until_ready(span_pooling(hidden_states, attention_mask))
    expected = span_pooling_ref(hidden_states, attention_mask)
    assert pooled.shape == (B, D)
    # Tolerance accounts for the EUP approximate reciprocal (~1e-4 rel error).
    assert jnp.allclose(pooled, expected, atol=5e-3, rtol=5e-3), "mismatch (B=16)"

    # Ragged batch (not a multiple of the tile) exercises the padding path.
    B2 = 5
    hidden2 = jax.random.normal(k_h2, (B2, L, D), dtype=jnp.float32)
    lens2 = jax.random.randint(k_len2, (B2,), minval=1, maxval=L + 1)
    mask2 = (jnp.arange(L)[None, :] < lens2[:, None]).astype(jnp.float32)

    pooled2 = jax.block_until_ready(span_pooling(hidden2, mask2))
    expected2 = span_pooling_ref(hidden2, mask2)
    assert pooled2.shape == (B2, D)
    assert jnp.allclose(pooled2, expected2, atol=5e-3, rtol=5e-3), "mismatch (B=5)"

    print("KERNEL_OK")
</pallas_src>

<mosaic_0001>
module attributes {stable_mosaic.version = 11 : i64} {
  func.func @span_mean_pool_kernel(%arg0: i32, %arg1: memref<8x9x768xf32, #tpu.memory_space<vmem>>, %arg2: memref<8x9xf32, #tpu.memory_space<vmem>>, %arg3: memref<8x768xf32, #tpu.memory_space<vmem>>) attributes {dimension_semantics = [#tpu.dimension_semantics<parallel>], iteration_bounds = array<i64: 2>, scalar_prefetch = 0 : i64, scratch_operands = 0 : i64, tpu.core_type = #tpu.core_type<tc>, window_params = [{transform_indices = @transform_0, window_bounds = array<i64: 8, 9, 768>}, {transform_indices = @transform_1, window_bounds = array<i64: 8, 9>}, {transform_indices = @transform_2, window_bounds = array<i64: 8, 768>}]} {
    %c0 = arith.constant 0 : index
    %c0_0 = arith.constant 0 : index
    %c0_1 = arith.constant 0 : index
    %0 = vector.load %arg1[%c0, %c0_0, %c0_1] : memref<8x9x768xf32, #tpu.memory_space<vmem>>, vector<8x9x768xf32>
    %c0_2 = arith.constant 0 : index
    %c0_3 = arith.constant 0 : index
    %1 = vector.load %arg2[%c0_2, %c0_3] : memref<8x9xf32, #tpu.memory_space<vmem>>, vector<8x9xf32>
    %2 = vector.shape_cast %1 : vector<8x9xf32> to vector<8x9x1xf32>
    %3 = vector.broadcast %2 : vector<8x9x1xf32> to vector<8x9x768xf32>
    %4 = arith.mulf %0, %3 : vector<8x9x768xf32>
    %cst = arith.constant dense<0.000000e+00> : vector<8x768xf32>
    %5 = vector.multi_reduction <add>, %4, %cst [1] : vector<8x9x768xf32> to vector<8x768xf32>
    %cst_4 = arith.constant dense<0.000000e+00> : vector<8xf32>
    %6 = vector.multi_reduction <add>, %1, %cst_4 [1] : vector<8x9xf32> to vector<8xf32>
    %7 = vector.shape_cast %6 : vector<8xf32> to vector<8x1xf32>
    %cst_5 = arith.constant 9.99999971E-10 : f32
    %8 = vector.broadcast %cst_5 : f32 to vector<8x1xf32>
    %9 = arith.maximumf %7, %8 : vector<8x1xf32>
    %10 = tpu.reciprocal %9 {approx = true} : vector<8x1xf32> -> vector<8x1xf32>
    %11 = vector.broadcast %10 : vector<8x1xf32> to vector<8x768xf32>
    %12 = arith.mulf %5, %11 : vector<8x768xf32>
    %c0_6 = arith.constant 0 : index
    %c0_7 = arith.constant 0 : index
    %13 = vector.load %arg3[%c0_6, %c0_7] : memref<8x768xf32, #tpu.memory_space<vmem>>, vector<8x768xf32>
    tpu.vector_store %arg3[%c0_6, %c0_7], %12 {strides = array<i32>} : memref<8x768xf32, #tpu.memory_space<vmem>>, vector<8x768xf32>,
    return
  }
  func.func @transform_0(%arg0: i32) -> (i32, i32, i32) {
    %c0_i32 = arith.constant 0 : i32
    %c0_i32_0 = arith.constant 0 : i32
    %c0_i32_1 = arith.constant 0 : i32
    return %arg0, %c0_i32, %c0_i32_0 : i32, i32, i32
  }
  func.func @transform_1(%arg0: i32) -> (i32, i32) {
    %c0_i32 = arith.constant 0 : i32
    %c0_i32_0 = arith.constant 0 : i32
    return %arg0, %c0_i32 : i32, i32
  }
  func.func @transform_2(%arg0: i32) -> (i32, i32) {
    %c0_i32 = arith.constant 0 : i32
    %c0_i32_0 = arith.constant 0 : i32
    return %arg0, %c0_i32 : i32, i32
  }
}

</mosaic_0001>

<llo_original>
// kernel: tpu_custom_call.1
$region0: #{tpu_custom_call.1}
  #allocation0 [shape = 'u32[]', space=smem, size = 0x4, offset = 0x4, fixed_abs, tag = 'smem constant byte address 0x4 - core index']
  #allocation1 [shape = 'u32[72,128]{1,0:T(1,128)}', space=vmem, size = 0x9000, scoped, tag = 'internal scratch']
  %s0 = inlined_call_operand.vmem [shape: f32[16,9,768], index: 0, kind: input, shape index: {}]
  %s1 = inlined_call_operand.vmem [shape: f32[16,9], index: 1, kind: input, shape index: {}]
  %s2 = inlined_call_operand.hbm [shape: f32[16,768], index: 2, kind: output, shape index: {}]
  %s3 = sld [smem:[#allocation0]]
  $region41: #{tpu_custom_call.1} parent=0
    _
  %s5 = ssub.s32 1, %s3
  %s6 = scalar_select 0, %s5, %s3
  $region1: #{tpu_custom_call.1} parent=0
    #allocation2 [shape = 'u8[49152]{0}', space=vmem, size = 0xc000, scoped, tag = 'output window, operand 0']
    #allocation3 [shape = 's32[2]{0}', space=sflag, size = 0x8, scoped, tag = 'scoped memory for tpu_custom_call.1']
    %7 = vsyncpa [#allocation3], 0
    %s8 = scalar_lea.sflag [#allocation3], 1
    %9 = vsyncpa %s8, 0
    loop: start=0, step=1, limit=4
    $region2: #{tpu_custom_call.1} parent=1 // loop_pre_header
      _
    $region3: #{tpu_custom_call.1} parent=1 // loop_header
      %s11 = sphi 0, %s15
      %p12 = scmp.ge.s32.totalorder %s11, 4
      %s21 = sphi 0, %s23
      %s24 = sphi 0, %s21
      %s25 = sphi 0, %s24
      %s41 = sphi 0, %s25
      %s47 = sphi 0, %s49
      %s50 = sphi 0, %s47
      %s51 = sphi 0, %s50
      %s67 = sphi 0, %s51
      %s73 = sphi 0, %s75
      %s76 = sphi 0, %s73
      %s77 = sphi 0, %s76
      %s93 = sphi 0, %s77
    $region4: #{tpu_custom_call.1} parent=1 // loop_header_branch
      %14 = sbr.rel (%p12) target = $region8
    $region5: #{tpu_custom_call.1} parent=1 // loop_body
      %s16 = ssub.s32 %s11, 1
      %s17 = ssub.s32 %s11, 2
      %s18 = sadd.s32 %s11, 1
      %s19 = ssub.s32 %s11, %s18
      %p20 = scmp.eq.s32.totalorder %s19, 0
      %s22 = sadd.s32 %s21, 1
      %s23 = scalar_select %p20, %s21, %s22
      %p26 = pneg %p20
      %p27 = scmp.eq.s32.totalorder %s11, 1
      %p28 = por %p26, %p27
      %p29 = scmp.ne.s32.totalorder %s21, %s24
      %p30 = scmp.eq.s32.totalorder %s11, 0
      %p31 = por %p29, %p30
      %p32 = scmp.ne.s32.totalorder %s21, %s24
      %p33 = scmp.eq.s32.totalorder %s16, 1
      %p34 = por %p32, %p33
      %p35 = scmp.ne.s32.totalorder %s24, %s25
      %p36 = scmp.eq.s32.totalorder %s16, 0
      %p37 = por %p35, %p36
      %p38 = scmp.ne.s32.totalorder %s24, %s25
      %p39 = scmp.eq.s32.totalorder %s17, 1
      %p40 = por %p38, %p39
      %p42 = scmp.ne.s32.totalorder %s25, %s41
      %p43 = scmp.eq.s32.totalorder %s17, 0
      %p44 = por %p42, %p43
      %s45 = ssub.s32 %s11, %s18
      %p46 = scmp.eq.s32.totalorder %s45, 0
      %s48 = sadd.s32 %s47, 1
      %s49 = scalar_select %p46, %s47, %s48
      %p52 = pneg %p46
      %p53 = scmp.eq.s32.totalorder %s11, 1
      %p54 = por %p52, %p53
      %p55 = scmp.ne.s32.totalorder %s47, %s50
      %p56 = scmp.eq.s32.totalorder %s11, 0
      %p57 = por %p55, %p56
      %p58 = scmp.ne.s32.totalorder %s47, %s50
      %p59 = scmp.eq.s32.totalorder %s16, 1
      %p60 = por %p58, %p59
      %p61 = scmp.ne.s32.totalorder %s50, %s51
      %p62 = scmp.eq.s32.totalorder %s16, 0
      %p63 = por %p61, %p62
      %p64 = scmp.ne.s32.totalorder %s50, %s51
      %p65 = scmp.eq.s32.totalorder %s17, 1
      %p66 = por %p64, %p65
      %p68 = scmp.ne.s32.totalorder %s51, %s67
      %p69 = scmp.eq.s32.totalorder %s17, 0
      %p70 = por %p68, %p69
      %s71 = ssub.s32 %s11, %s18
      %p72 = scmp.eq.s32.totalorder %s71, 0
      %s74 = sadd.s32 %s73, 1
      %s75 = scalar_select %p72, %s73, %s74
      %p78 = pneg %p72
      %p79 = scmp.eq.s32.totalorder %s11, 1
      %p80 = por %p78, %p79
      %p81 = scmp.ne.s32.totalorder %s73, %s76
      %p82 = scmp.eq.s32.totalorder %s11, 0
      %p83 = por %p81, %p82
      %p84 = scmp.ne.s32.totalorder %s73, %s76
      %p85 = scmp.eq.s32.totalorder %s16, 1
      %p86 = por %p84, %p85
      %p87 = scmp.ne.s32.totalorder %s76, %s77
      %p88 = scmp.eq.s32.totalorder %s16, 0
      %p89 = por %p87, %p88
      %p90 = scmp.ne.s32.totalorder %s76, %s77
      %p91 = scmp.eq.s32.totalorder %s17, 1
      %p92 = por %p90, %p91
      %p94 = scmp.ne.s32.totalorder %s77, %s93
      %p95 = scmp.eq.s32.totalorder %s17, 0
      %p96 = por %p94, %p95
      %p97 = scmp.le.s32.totalorder 1, %s11
      %p98 = scmp.lt.s32.totalorder %s11, 3
      %p99 = pnand %p97, %p98
      %p100 = pneg %p99
      // Predicated region
      $region9: #{tpu_custom_call.1} parent=5 // pred_check
        _
      $region10: #{tpu_custom_call.1} parent=5 // pred_check_branch
        %102 = sbr.rel (%p99) target = $region12
      $region11: #{tpu_custom_call.1} parent=5 // pred_region
        %s103 = ssub.s32 %s11, 1
      $region12: #{tpu_custom_call.1} parent=5 // pred_fallthru
        _
      %p104 = scmp.lt.s32.totalorder %s11, 2
      // Predicated region
      $region13: #{tpu_custom_call.1} parent=5 // pred_check
        %p105 = pneg %p104
      $region14: #{tpu_custom_call.1} parent=5 // pred_check_branch
        %107 = sbr.rel (%p105) target = $region16
      $region15: #{tpu_custom_call.1} parent=5 // pred_region
        // Predicated region
        $region17: #{tpu_custom_call.1} parent=15 // pred_check
          %p108 = pneg %p31
        $region18: #{tpu_custom_call.1} parent=15 // pred_check_branch
          %110 = sbr.rel (%p108) target = $region20
        $region19: #{tpu_custom_call.1} parent=15 // pred_region
          %s111 = smul.u32 8, %s11
          %p112 = scmp.lt.s32.totalorder %s111, 15
          %s113 = scalar_select %p112, %s111, 15
          %s114 = smul.addr %s113, 12
          %s115 = smul.addr %s114, 8
          %s116 = scalar_lea.vmem %s0, %s115
          %s117 = smul.u32 8, %s11
        $region20: #{tpu_custom_call.1} parent=15 // pred_fallthru
          _
        // Predicated region
        $region21: #{tpu_custom_call.1} parent=15 // pred_check
          %p118 = pneg %p57
        $region22: #{tpu_custom_call.1} parent=15 // pred_check_branch
          %120 = sbr.rel (%p118) target = $region24
        $region23: #{tpu_custom_call.1} parent=15 // pred_region
          %p121 = scmp.lt.s32.totalorder %s11, 1
          %s122 = scalar_select %p121, %s11, 1
          %s123 = smul.addr %s122, 8
          %s124 = scalar_lea.vmem %s1, %s123
        $region24: #{tpu_custom_call.1} parent=15 // pred_fallthru
          _
      $region16: #{tpu_custom_call.1} parent=5 // pred_fallthru
        _
      %p125 = scmp.le.s32.totalorder 1, %s11
      %p126 = scmp.lt.s32.totalorder %s11, 3
      %p127 = pnand %p125, %p126
      %p128 = pneg %p127
      // Predicated region
      $region25: #{tpu_custom_call.1} parent=5 // pred_check
        _
      $region26: #{tpu_custom_call.1} parent=5 // pred_check_branch
        %130 = sbr.rel (%p127) target = $region28
      $region27: #{tpu_custom_call.1} parent=5 // pred_region
        %s131 = ssub.s32 %s11, 1
        %s132 = smul.u32 8, %s16
        %p133 = scmp.lt.s32.totalorder %s132, 15
        %s134 = scalar_select %p133, %s132, 15
        %s135 = smul.addr %s134, 12
        %s136 = smul.addr %s135, 8
        %s137 = scalar_lea.vmem %s0, %s136
        %p138 = pneg %p37
        %p139 = pneg %p34
        %p140 = scmp.lt.s32.totalorder %s16, 1
        %s141 = scalar_select %p140, %s16, 1
        %s142 = smul.addr %s141, 8
        %s143 = scalar_lea.vmem %s1, %s142
        %p144 = pneg %p63
        %p145 = pneg %p60
        %p146 = pneg %p89
        %p147 = pneg %p86
        %s148 = sand.u32 %s76, 1
        %s149 = scalar_lea.sflag [#allocation3], %s148
        %s150 = sand.u32 %s76, 1
        %s151 = smul.addr %s150, 48
        %s152 = scalar_lea.vmem [#allocation2], %s151
        %s153 = smul.u32 8, %s16
        %p154 = scmp.lt.s32.totalorder %s153, 15
        %s155 = scalar_select %p154, %s153, 15
        %s156 = smul.addr %s155, 12
        %s157 = smul.addr %s156, 8
        %s158 = scalar_lea.vmem %s0, %s157
        %s159 = smul.u32 8, %s16
        %p160 = scmp.lt.s32.totalorder %s16, 1
        %s161 = scalar_select %p160, %s16, 1
        %s162 = smul.addr %s161, 8
        %s163 = scalar_lea.vmem %s1, %s162
        %v164 = vld [vmem:[%s158] sm:$0xff]
        %v165 = vld [vmem:[%s158 + $0x8] sm:$0xff]
        %v166 = vld [vmem:[%s158 + $0x10] sm:$0xff]
        %v167 = vld [vmem:[%s158 + $0x18] sm:$0xff]
        %v168 = vld [vmem:[%s158 + $0x20] sm:$0xff]
        %v169 = vld [vmem:[%s158 + $0x28] sm:$0xff]
        %v170 = vld [vmem:[%s158 + $0x30] sm:$0x1]
        %v171 = vld [vmem:[%s158 + $0x38] sm:$0x1]
        %v172 = vld [vmem:[%s158 + $0x40] sm:$0x1]
        %v173 = vld [vmem:[%s158 + $0x48] sm:$0x1]
        %v174 = vld [vmem:[%s158 + $0x50] sm:$0x1]
        %v175 = vld [vmem:[%s158 + $0x58] sm:$0x1]
        %v176 = vld [vmem:[%s158 + $0x60] sm:$0xff]
        %v177 = vld [vmem:[%s158 + $0x68] sm:$0xff]
        %v178 = vld [vmem:[%s158 + $0x70] sm:$0xff]
        %v179 = vld [vmem:[%s158 + $0x78] sm:$0xff]
        %v180 = vld [vmem:[%s158 + $0x80] sm:$0xff]
        %v181 = vld [vmem:[%s158 + $0x88] sm:$0xff]
        %v182 = vld [vmem:[%s158 + $0x90] sm:$0x1]
        %v183 = vld [vmem:[%s158 + $0x98] sm:$0x1]
        %v184 = vld [vmem:[%s158 + $0xa0] sm:$0x1]
        %v185 = vld [vmem:[%s158 + $0xa8] sm:$0x1]
        %v186 = vld [vmem:[%s158 + $0xb0] sm:$0x1]
        %v187 = vld [vmem:[%s158 + $0xb8] sm:$0x1]
        %v188 = vld [vmem:[%s158 + $0xc0] sm:$0xff]
        %v189 = vld [vmem:[%s158 + $0xc8] sm:$0xff]
        %v190 = vld [vmem:[%s158 + $0xd0] sm:$0xff]
        %v191 = vld [vmem:[%s158 + $0xd8] sm:$0xff]
        %v192 = vld [vmem:[%s158 + $0xe0] sm:$0xff]
        %v193 = vld [vmem:[%s158 + $0xe8] sm:$0xff]
        %v194 = vld [vmem:[%s158 + $0xf0] sm:$0x1]
        %v195 = vld [vmem:[%s158 + $0xf8] sm:$0x1]
        %v196 = vld [vmem:[%s158 + $0x100] sm:$0x1]
        %v197 = vld [vmem:[%s158 + $0x108] sm:$0x1]
        %v198 = vld [vmem:[%s158 + $0x110] sm:$0x1]
        %v199 = vld [vmem:[%s158 + $0x118] sm:$0x1]
        %v200 = vld [vmem:[%s158 + $0x120] sm:$0xff]
        %v201 = vld [vmem:[%s158 + $0x128] sm:$0xff]
        %v202 = vld [vmem:[%s158 + $0x130] sm:$0xff]
        %v203 = vld [vmem:[%s158 + $0x138] sm:$0xff]
        %v204 = vld [vmem:[%s158 + $0x140] sm:$0xff]
        %v205 = vld [vmem:[%s158 + $0x148] sm:$0xff]
        %v206 = vld [vmem:[%s158 + $0x150] sm:$0x1]
        %v207 = vld [vmem:[%s158 + $0x158] sm:$0x1]
        %v208 = vld [vmem:[%s158 + $0x160] sm:$0x1]
        %v209 = vld [vmem:[%s158 + $0x168] sm:$0x1]
        %v210 = vld [vmem:[%s158 + $0x170] sm:$0x1]
        %v211 = vld [vmem:[%s158 + $0x178] sm:$0x1]
        %v212 = vld [vmem:[%s158 + $0x180] sm:$0xff]
        %v213 = vld [vmem:[%s158 + $0x188] sm:$0xff]
        %v214 = vld [vmem:[%s158 + $0x190] sm:$0xff]
        %v215 = vld [vmem:[%s158 + $0x198] sm:$0xff]
        %v216 = vld [vmem:[%s158 + $0x1a0] sm:$0xff]
        %v217 = vld [vmem:[%s158 + $0x1a8] sm:$0xff]
        %v218 = vld [vmem:[%s158 + $0x1b0] sm:$0x1]
        %v219 = vld [vmem:[%s158 + $0x1b8] sm:$0x1]
        %v220 = vld [vmem:[%s158 + $0x1c0] sm:$0x1]
        %v221 = vld [vmem:[%s158 + $0x1c8] sm:$0x1]
        %v222 = vld [vmem:[%s158 + $0x1d0] sm:$0x1]
        %v223 = vld [vmem:[%s158 + $0x1d8] sm:$0x1]
        %v224 = vld [vmem:[%s158 + $0x1e0] sm:$0xff]
        %v225 = vld [vmem:[%s158 + $0x1e8] sm:$0xff]
        %v226 = vld [vmem:[%s158 + $0x1f0] sm:$0xff]
        %v227 = vld [vmem:[%s158 + $0x1f8] sm:$0xff]
        %v228 = vld [vmem:[%s158 + $0x200] sm:$0xff]
        %v229 = vld [vmem:[%s158 + $0x208] sm:$0xff]
        %v230 = vld [vmem:[%s158 + $0x210] sm:$0x1]
        %v231 = vld [vmem:[%s158 + $0x218] sm:$0x1]
        %v232 = vld [vmem:[%s158 + $0x220] sm:$0x1]
        %v233 = vld [vmem:[%s158 + $0x228] sm:$0x1]
        %v234 = vld [vmem:[%s158 + $0x230] sm:$0x1]
        %v235 = vld [vmem:[%s158 + $0x238] sm:$0x1]
        %v236 = vld [vmem:[%s158 + $0x240] sm:$0xff]
        %v237 = vld [vmem:[%s158 + $0x248] sm:$0xff]
        %v238 = vld [vmem:[%s158 + $0x250] sm:$0xff]
        %v239 = vld [vmem:[%s158 + $0x258] sm:$0xff]
        %v240 = vld [vmem:[%s158 + $0x260] sm:$0xff]
        %v241 = vld [vmem:[%s158 + $0x268] sm:$0xff]
        %v242 = vld [vmem:[%s158 + $0x270] sm:$0x1]
        %v243 = vld [vmem:[%s158 + $0x278] sm:$0x1]
        %v244 = vld [vmem:[%s158 + $0x280] sm:$0x1]
        %v245 = vld [vmem:[%s158 + $0x288] sm:$0x1]
        %v246 = vld [vmem:[%s158 + $0x290] sm:$0x1]
        %v247 = vld [vmem:[%s158 + $0x298] sm:$0x1]
        %v248 = vld [vmem:[%s158 + $0x2a0] sm:$0xff]
        %v249 = vld [vmem:[%s158 + $0x2a8] sm:$0xff]
        %v250 = vld [vmem:[%s158 + $0x2b0] sm:$0xff]
        %v251 = vld [vmem:[%s158 + $0x2b8] sm:$0xff]
        %v252 = vld [vmem:[%s158 + $0x2c0] sm:$0xff]
        %v253 = vld [vmem:[%s158 + $0x2c8] sm:$0xff]
        %v254 = vld [vmem:[%s158 + $0x2d0] sm:$0x1]
        %v255 = vld [vmem:[%s158 + $0x2d8] sm:$0x1]
        %v256 = vld [vmem:[%s158 + $0x2e0] sm:$0x1]
        %v257 = vld [vmem:[%s158 + $0x2e8] sm:$0x1]
        %v258 = vld [vmem:[%s158 + $0x2f0] sm:$0x1]
        %v259 = vld [vmem:[%s158 + $0x2f8] sm:$0x1]
        %v260 = vld [vmem:[%s163] sm:$0xff]
        %v261 = vperm.slane %v260, 0
        %v262 = vlaneseq
        %v263 = vshrl.u32 %v262, 7
        %265 = vset.pattern.permute.xlu0 %v263
        %266 = vperm.xlu0 %265, %v261
        %v267 = vpop.permute.xlu0 %266
        %v268 = vlaneseq
        %v269 = vshrl.u32 %v268, 7
        %v270 = vadd.s32 %v269, 8
        %271 = vset.pattern.permute.xlu0 %v270
        %272 = vperm.xlu0 %271, %v261
        %v273 = vpop.permute.xlu0 %272
        %v274 = vperm.slane %v260, 1
        %v275 = vlaneseq
        %v276 = vshrl.u32 %v275, 7
        %278 = vset.pattern.permute.xlu0 %v276
        %279 = vperm.xlu0 %278, %v274
        %v280 = vpop.permute.xlu0 %279
        %v281 = vlaneseq
        %v282 = vshrl.u32 %v281, 7
        %v283 = vadd.s32 %v282, 8
        %284 = vset.pattern.permute.xlu0 %v283
        %285 = vperm.xlu0 %284, %v274
        %v286 = vpop.permute.xlu0 %285
        %v287 = vperm.slane %v260, 2
        %v288 = vlaneseq
        %v289 = vshrl.u32 %v288, 7
        %291 = vset.pattern.permute.xlu0 %v289
        %292 = vperm.xlu0 %291, %v287
        %v293 = vpop.permute.xlu0 %292
        %v294 = vlaneseq
        %v295 = vshrl.u32 %v294, 7
        %v296 = vadd.s32 %v295, 8
        %297 = vset.pattern.permute.xlu0 %v296
        %298 = vperm.xlu0 %297, %v287
        %v299 = vpop.permute.xlu0 %298
        %v300 = vperm.slane %v260, 3
        %v301 = vlaneseq
        %v302 = vshrl.u32 %v301, 7
        %304 = vset.pattern.permute.xlu0 %v302
        %305 = vperm.xlu0 %304, %v300
        %v306 = vpop.permute.xlu0 %305
        %v307 = vlaneseq
        %v308 = vshrl.u32 %v307, 7
        %v309 = vadd.s32 %v308, 8
        %310 = vset.pattern.permute.xlu0 %v309
        %311 = vperm.xlu0 %310, %v300
        %v312 = vpop.permute.xlu0 %311
        %v313 = vperm.slane %v260, 4
        %v314 = vlaneseq
        %v315 = vshrl.u32 %v314, 7
        %317 = vset.pattern.permute.xlu0 %v315
        %318 = vperm.xlu0 %317, %v313
        %v319 = vpop.permute.xlu0 %318
        %v320 = vlaneseq
        %v321 = vshrl.u32 %v320, 7
        %v322 = vadd.s32 %v321, 8
        %323 = vset.pattern.permute.xlu0 %v322
        %324 = vperm.xlu0 %323, %v313
        %v325 = vpop.permute.xlu0 %324
        %v326 = vperm.slane %v260, 5
        %v327 = vlaneseq
        %v328 = vshrl.u32 %v327, 7
        %330 = vset.pattern.permute.xlu0 %v328
        %331 = vperm.xlu0 %330, %v326
        %v332 = vpop.permute.xlu0 %331
        %v333 = vlaneseq
        %v334 = vshrl.u32 %v333, 7
        %v335 = vadd.s32 %v334, 8
        %336 = vset.pattern.permute.xlu0 %v335
        %337 = vperm.xlu0 %336, %v326
        %v338 = vpop.permute.xlu0 %337
        %v339 = vperm.slane %v260, 6
        %v340 = vlaneseq
        %v341 = vshrl.u32 %v340, 7
        %343 = vset.pattern.permute.xlu0 %v341
        %344 = vperm.xlu0 %343, %v339
        %v345 = vpop.permute.xlu0 %344
        %v346 = vlaneseq
        %v347 = vshrl.u32 %v346, 7
        %v348 = vadd.s32 %v347, 8
        %349 = vset.pattern.permute.xlu0 %v348
        %350 = vperm.xlu0 %349, %v339
        %v351 = vpop.permute.xlu0 %350
        %v352 = vperm.slane %v260, 7
        %v353 = vlaneseq
        %v354 = vshrl.u32 %v353, 7
        %356 = vset.pattern.permute.xlu0 %v354
        %357 = vperm.xlu0 %356, %v352
        %v358 = vpop.permute.xlu0 %357
        %v359 = vlaneseq
        %v360 = vshrl.u32 %v359, 7
        %v361 = vadd.s32 %v360, 8
        %362 = vset.pattern.permute.xlu0 %v361
        %363 = vperm.xlu0 %362, %v352
        %v364 = vpop.permute.xlu0 %363
        %v365 = vmul.f32 %v164, %v267
        %v366 = vmul.f32 %v165, %v267
        %v367 = vmul.f32 %v166, %v267
        %v368 = vmul.f32 %v167, %v267
        %v369 = vmul.f32 %v168, %v267
        %v370 = vmul.f32 %v169, %v267
        %v371 = vmul.f32 %v170, %v273
        %v372 = vmul.f32 %v171, %v273
        %v373 = vmul.f32 %v172, %v273
        %v374 = vmul.f32 %v173, %v273
        %v375 = vmul.f32 %v174, %v273
        %v376 = vmul.f32 %v175, %v273
        %v377 = vmul.f32 %v176, %v280
        %v378 = vmul.f32 %v177, %v280
        %v379 = vmul.f32 %v178, %v280
        %v380 = vmul.f32 %v179, %v280
        %v381 = vmul.f32 %v180, %v280
        %v382 = vmul.f32 %v181, %v280
        %v383 = vmul.f32 %v182, %v286
        %v384 = vmul.f32 %v183, %v286
        %v385 = vmul.f32 %v184, %v286
        %v386 = vmul.f32 %v185, %v286
        %v387 = vmul.f32 %v186, %v286
        %v388 = vmul.f32 %v187, %v286
        %v389 = vmul.f32 %v188, %v293
        %v390 = vmul.f32 %v189, %v293
        %v391 = vmul.f32 %v190, %v293
        %v392 = vmul.f32 %v191, %v293
        %v393 = vmul.f32 %v192, %v293
        %v394 = vmul.f32 %v193, %v293
        %v395 = vmul.f32 %v194, %v299
        %v396 = vmul.f32 %v195, %v299
        %v397 = vmul.f32 %v196, %v299
        %v398 = vmul.f32 %v197, %v299
        %v399 = vmul.f32 %v198, %v299
        %v400 = vmul.f32 %v199, %v299
        %v401 = vmul.f32 %v200, %v306
        %v402 = vmul.f32 %v201, %v306
        %v403 = vmul.f32 %v202, %v306
        %v404 = vmul.f32 %v203, %v306
        %v405 = vmul.f32 %v204, %v306
        %v406 = vmul.f32 %v205, %v306
        %v407 = vmul.f32 %v206, %v312
        %v408 = vmul.f32 %v207, %v312
        %v409 = vmul.f32 %v208, %v312
        %v410 = vmul.f32 %v209, %v312
        %v411 = vmul.f32 %v210, %v312
        %v412 = vmul.f32 %v211, %v312
        %v413 = vmul.f32 %v212, %v319
        %v414 = vmul.f32 %v213, %v319
        %v415 = vmul.f32 %v214, %v319
        %v416 = vmul.f32 %v215, %v319
        %v417 = vmul.f32 %v216, %v319
        %v418 = vmul.f32 %v217, %v319
        %v419 = vmul.f32 %v218, %v325
        %v420 = vmul.f32 %v219, %v325
        %v421 = vmul.f32 %v220, %v325
        %v422 = vmul.f32 %v221, %v325
        %v423 = vmul.f32 %v222, %v325
        %v424 = vmul.f32 %v223, %v325
        %v425 = vmul.f32 %v224, %v332
        %v426 = vmul.f32 %v225, %v332
        %v427 = vmul.f32 %v226, %v332
        %v428 = vmul.f32 %v227, %v332
        %v429 = vmul.f32 %v228, %v332
        %v430 = vmul.f32 %v229, %v332
        %v431 = vmul.f32 %v230, %v338
        %v432 = vmul.f32 %v231, %v338
        %v433 = vmul.f32 %v232, %v338
        %v434 = vmul.f32 %v233, %v338
        %v435 = vmul.f32 %v234, %v338
        %v436 = vmul.f32 %v235, %v338
        %v437 = vmul.f32 %v236, %v345
        %v438 = vmul.f32 %v237, %v345
        %v439 = vmul.f32 %v238, %v345
        %v440 = vmul.f32 %v239, %v345
        %v441 = vmul.f32 %v240, %v345
        %v442 = vmul.f32 %v241, %v345
        %v443 = vmul.f32 %v242, %v351
        %v444 = vmul.f32 %v243, %v351
        %v445 = vmul.f32 %v244, %v351
        %v446 = vmul.f32 %v245, %v351
        %v447 = vmul.f32 %v246, %v351
        %v448 = vmul.f32 %v247, %v351
        %v449 = vmul.f32 %v248, %v358
        %v450 = vmul.f32 %v249, %v358
        %v451 = vmul.f32 %v250, %v358
        %v452 = vmul.f32 %v251, %v358
        %v453 = vmul.f32 %v252, %v358
        %v454 = vmul.f32 %v253, %v358
        %v455 = vmul.f32 %v254, %v364
        %v456 = vmul.f32 %v255, %v364
        %v457 = vmul.f32 %v256, %v364
        %v458 = vmul.f32 %v257, %v364
        %v459 = vmul.f32 %v258, %v364
        %v460 = vmul.f32 %v259, %v364
        %vm461 = vcmask 1040384
        %v462 = vsel %vm461, %v371, 0.0
        %v463 = vadd.f32 %v365, %v462
        %v464 = vrot.slane %v463, 4
        %v465 = vadd.f32 %v463, %v464
        %v466 = vrot.slane %v465, 2
        %v467 = vadd.f32 %v465, %v466
        %v468 = vrot.slane %v467, 1
        %v469 = vadd.f32 %v467, %v468
        %v470 = vsel %vm461, %v372, 0.0
        %v471 = vadd.f32 %v366, %v470
        %v472 = vrot.slane %v471, 4
        %v473 = vadd.f32 %v471, %v472
        %v474 = vrot.slane %v473, 2
        %v475 = vadd.f32 %v473, %v474
        %v476 = vrot.slane %v475, 1
        %v477 = vadd.f32 %v475, %v476
        %v478 = vsel %vm461, %v373, 0.0
        %v479 = vadd.f32 %v367, %v478
        %v480 = vrot.slane %v479, 4
        %v481 = vadd.f32 %v479, %v480
        %v482 = vrot.slane %v481, 2
        %v483 = vadd.f32 %v481, %v482
        %v484 = vrot.slane %v483, 1
        %v485 = vadd.f32 %v483, %v484
        %v486 = vsel %vm461, %v374, 0.0
        %v487 = vadd.f32 %v368, %v486
        %v488 = vrot.slane %v487, 4
        %v489 = vadd.f32 %v487, %v488
        %v490 = vrot.slane %v489, 2
        %v491 = vadd.f32 %v489, %v490
        %v492 = vrot.slane %v491, 1
        %v493 = vadd.f32 %v491, %v492
        %v494 = vsel %vm461, %v375, 0.0
        %v495 = vadd.f32 %v369, %v494
        %v496 = vrot.slane %v495, 4
        %v497 = vadd.f32 %v495, %v496
        %v498 = vrot.slane %v497, 2
        %v499 = vadd.f32 %v497, %v498
        %v500 = vrot.slane %v499, 1
        %v501 = vadd.f32 %v499, %v500
        %v502 = vsel %vm461, %v376, 0.0
        %v503 = vadd.f32 %v370, %v502
        %v504 = vrot.slane %v503, 4
        %v505 = vadd.f32 %v503, %v504
        %v506 = vrot.slane %v505, 2
        %v507 = vadd.f32 %v505, %v506
        %v508 = vrot.slane %v507, 1
        %v509 = vadd.f32 %v507, %v508
        %v510 = vsel %vm461, %v383, 0.0
        %v511 = vadd.f32 %v377, %v510
        %v512 = vrot.slane %v511, 4
        %v513 = vadd.f32 %v511, %v512
        %v514 = vrot.slane %v513, 2
        %v515 = vadd.f32 %v513, %v514
        %v516 = vrot.slane %v515, 1
        %v517 = vadd.f32 %v515, %v516
        %v518 = vsel %vm461, %v384, 0.0
        %v519 = vadd.f32 %v378, %v518
        %v520 = vrot.slane %v519, 4
        %v521 = vadd.f32 %v519, %v520
        %v522 = vrot.slane %v521, 2
        %v523 = vadd.f32 %v521, %v522
        %v524 = vrot.slane %v523, 1
        %v525 = vadd.f32 %v523, %v524
        %v526 = vsel %vm461, %v385, 0.0
        %v527 = vadd.f32 %v379, %v526
        %v528 = vrot.slane %v527, 4
        %v529 = vadd.f32 %v527, %v528
        %v530 = vrot.slane %v529, 2
        %v531 = vadd.f32 %v529, %v530
        %v532 = vrot.slane %v531, 1
        %v533 = vadd.f32 %v531, %v532
        %v534 = vsel %vm461, %v386, 0.0
        %v535 = vadd.f32 %v380, %v534
        %v536 = vrot.slane %v535, 4
        %v537 = vadd.f32 %v535, %v536
        %v538 = vrot.slane %v537, 2
        %v539 = vadd.f32 %v537, %v538
        %v540 = vrot.slane %v539, 1
        %v541 = vadd.f32 %v539, %v540
        %v542 = vsel %vm461, %v387, 0.0
        %v543 = vadd.f32 %v381, %v542
        %v544 = vrot.slane %v543, 4
        %v545 = vadd.f32 %v543, %v544
        %v546 = vrot.slane %v545, 2
        %v547 = vadd.f32 %v545, %v546
        %v548 = vrot.slane %v547, 1
        %v549 = vadd.f32 %v547, %v548
        %v550 = vsel %vm461, %v388, 0.0
        %v551 = vadd.f32 %v382, %v550
        %v552 = vrot.slane %v551, 4
        %v553 = vadd.f32 %v551, %v552
        %v554 = vrot.slane %v553, 2
        %v555 = vadd.f32 %v553, %v554
        %v556 = vrot.slane %v555, 1
        %v557 = vadd.f32 %v555, %v556
        %v558 = vsel %vm461, %v395, 0.0
        %v559 = vadd.f32 %v389, %v558
        %v560 = vrot.slane %v559, 4
        %v561 = vadd.f32 %v559, %v560
        %v562 = vrot.slane %v561, 2
        %v563 = vadd.f32 %v561, %v562
        %v564 = vrot.slane %v563, 1
        %v565 = vadd.f32 %v563, %v564
        %v566 = vsel %vm461, %v396, 0.0
        %v567 = vadd.f32 %v390, %v566
        %v568 = vrot.slane %v567, 4
        %v569 = vadd.f32 %v567, %v568
        %v570 = vrot.slane %v569, 2
        %v571 = vadd.f32 %v569, %v570
        %v572 = vrot.slane %v571, 1
        %v573 = vadd.f32 %v571, %v572
        %v574 = vsel %vm461, %v397, 0.0
        %v575 = vadd.f32 %v391, %v574
        %v576 = vrot.slane %v575, 4
        %v577 = vadd.f32 %v575, %v576
        %v578 = vrot.slane %v577, 2
        %v579 = vadd.f32 %v577, %v578
        %v580 = vrot.slane %v579, 1
        %v581 = vadd.f32 %v579, %v580
        %v582 = vsel %vm461, %v398, 0.0
        %v583 = vadd.f32 %v392, %v582
        %v584 = vrot.slane %v583, 4
        %v585 = vadd.f32 %v583, %v584
        %v586 = vrot.slane %v585, 2
        %v587 = vadd.f32 %v585, %v586
        %v588 = vrot.slane %v587, 1
        %v589 = vadd.f32 %v587, %v588
        %v590 = vsel %vm461, %v399, 0.0
        %v591 = vadd.f32 %v393, %v590
        %v592 = vrot.slane %v591, 4
        %v593 = vadd.f32 %v591, %v592
        %v594 = vrot.slane %v593, 2
        %v595 = vadd.f32 %v593, %v594
        %v596 = vrot.slane %v595, 1
        %v597 = vadd.f32 %v595, %v596
        %v598 = vsel %vm461, %v400, 0.0
        %v599 = vadd.f32 %v394, %v598
        %v600 = vrot.slane %v599, 4
        %v601 = vadd.f32 %v599, %v600
        %v602 = vrot.slane %v601, 2
        %v603 = vadd.f32 %v601, %v602
        %v604 = vrot.slane %v603, 1
        %v605 = vadd.f32 %v603, %v604
        %v606 = vsel %vm461, %v407, 0.0
        %v607 = vadd.f32 %v401, %v606
        %v608 = vrot.slane %v607, 4
        %v609 = vadd.f32 %v607, %v608
        %v610 = vrot.slane %v609, 2
        %v611 = vadd.f32 %v609, %v610
        %v612 = vrot.slane %v611, 1
        %v613 = vadd.f32 %v611, %v612
        %v614 = vsel %vm461, %v408, 0.0
        %v615 = vadd.f32 %v402, %v614
        %v616 = vrot.slane %v615, 4
        %v617 = vadd.f32 %v615, %v616
        %v618 = vrot.slane %v617, 2
        %v619 = vadd.f32 %v617, %v618
        %v620 = vrot.slane %v619, 1
        %v621 = vadd.f32 %v619, %v620
        %v622 = vsel %vm461, %v409, 0.0
        %v623 = vadd.f32 %v403, %v622
        %v624 = vrot.slane %v623, 4
        %v625 = vadd.f32 %v623, %v624
        %v626 = vrot.slane %v625, 2
        %v627 = vadd.f32 %v625, %v626
        %v628 = vrot.slane %v627, 1
        %v629 = vadd.f32 %v627, %v628
        %v630 = vsel %vm461, %v410, 0.0
        %v631 = vadd.f32 %v404, %v630
        %v632 = vrot.slane %v631, 4
        %v633 = vadd.f32 %v631, %v632
        %v634 = vrot.slane %v633, 2
        %v635 = vadd.f32 %v633, %v634
        %v636 = vrot.slane %v635, 1
        %v637 = vadd.f32 %v635, %v636
        %v638 = vsel %vm461, %v411, 0.0
        %v639 = vadd.f32 %v405, %v638
        %v640 = vrot.slane %v639, 4
        %v641 = vadd.f32 %v639, %v640
        %v642 = vrot.slane %v641, 2
        %v643 = vadd.f32 %v641, %v642
        %v644 = vrot.slane %v643, 1
        %v645 = vadd.f32 %v643, %v644
        %v646 = vsel %vm461, %v412, 0.0
        %v647 = vadd.f32 %v406, %v646
        %v648 = vrot.slane %v647, 4
        %v649 = vadd.f32 %v647, %v648
        %v650 = vrot.slane %v649, 2
        %v651 = vadd.f32 %v649, %v650
        %v652 = vrot.slane %v651, 1
        %v653 = vadd.f32 %v651, %v652
        %v654 = vsel %vm461, %v419, 0.0
        %v655 = vadd.f32 %v413, %v654
        %v656 = vrot.slane %v655, 4
        %v657 = vadd.f32 %v655, %v656
        %v658 = vrot.slane %v657, 2
        %v659 = vadd.f32 %v657, %v658
        %v660 = vrot.slane %v659, 1
        %v661 = vadd.f32 %v659, %v660
        %v662 = vsel %vm461, %v420, 0.0
        %v663 = vadd.f32 %v414, %v662
        %v664 = vrot.slane %v663, 4
        %v665 = vadd.f32 %v663, %v664
        %v666 = vrot.slane %v665, 2
        %v667 = vadd.f32 %v665, %v666
        %v668 = vrot.slane %v667, 1
        %v669 = vadd.f32 %v667, %v668
        %v670 = vsel %vm461, %v421, 0.0
        %v671 = vadd.f32 %v415, %v670
        %v672 = vrot.slane %v671, 4
        %v673 = vadd.f32 %v671, %v672
        %v674 = vrot.slane %v673, 2
        %v675 = vadd.f32 %v673, %v674
        %v676 = vrot.slane %v675, 1
        %v677 = vadd.f32 %v675, %v676
        %v678 = vsel %vm461, %v422, 0.0
        %v679 = vadd.f32 %v416, %v678
        %v680 = vrot.slane %v679, 4
        %v681 = vadd.f32 %v679, %v680
        %v682 = vrot.slane %v681, 2
        %v683 = vadd.f32 %v681, %v682
        %v684 = vrot.slane %v683, 1
        %v685 = vadd.f32 %v683, %v684
        %v686 = vsel %vm461, %v423, 0.0
        %v687 = vadd.f32 %v417, %v686
        %v688 = vrot.slane %v687, 4
        %v689 = vadd.f32 %v687, %v688
        %v690 = vrot.slane %v689, 2
        %v691 = vadd.f32 %v689, %v690
        %v692 = vrot.slane %v691, 1
        %v693 = vadd.f32 %v691, %v692
        %v694 = vsel %vm461, %v424, 0.0
        %v695 = vadd.f32 %v418, %v694
        %v696 = vrot.slane %v695, 4
        %v697 = vadd.f32 %v695, %v696
        %v698 = vrot.slane %v697, 2
        %v699 = vadd.f32 %v697, %v698
        %v700 = vrot.slane %v699, 1
        %v701 = vadd.f32 %v699, %v700
        %v702 = vsel %vm461, %v431, 0.0
        %v703 = vadd.f32 %v425, %v702
        %v704 = vrot.slane %v703, 4
        %v705 = vadd.f32 %v703, %v704
        %v706 = vrot.slane %v705, 2
        %v707 = vadd.f32 %v705, %v706
        %v708 = vrot.slane %v707, 1
        %v709 = vadd.f32 %v707, %v708
        %v710 = vsel %vm461, %v432, 0.0
        %v711 = vadd.f32 %v426, %v710
        %v712 = vrot.slane %v711, 4
        %v713 = vadd.f32 %v711, %v712
        %v714 = vrot.slane %v713, 2
        %v715 = vadd.f32 %v713, %v714
        %v716 = vrot.slane %v715, 1
        %v717 = vadd.f32 %v715, %v716
        %v718 = vsel %vm461, %v433, 0.0
        %v719 = vadd.f32 %v427, %v718
        %v720 = vrot.slane %v719, 4
        %v721 = vadd.f32 %v719, %v720
        %v722 = vrot.slane %v721, 2
        %v723 = vadd.f32 %v721, %v722
        %v724 = vrot.slane %v723, 1
        %v725 = vadd.f32 %v723, %v724
        %v726 = vsel %vm461, %v434, 0.0
        %v727 = vadd.f32 %v428, %v726
        %v728 = vrot.slane %v727, 4
        %v729 = vadd.f32 %v727, %v728
        %v730 = vrot.slane %v729, 2
        %v731 = vadd.f32 %v729, %v730
        %v732 = vrot.slane %v731, 1
        %v733 = vadd.f32 %v731, %v732
        %v734 = vsel %vm461, %v435, 0.0
        %v735 = vadd.f32 %v429, %v734
        %v736 = vrot.slane %v735, 4
        %v737 = vadd.f32 %v735, %v736
        %v738 = vrot.slane %v737, 2
        %v739 = vadd.f32 %v737, %v738
        %v740 = vrot.slane %v739, 1
        %v741 = vadd.f32 %v739, %v740
        %v742 = vsel %vm461, %v436, 0.0
        %v743 = vadd.f32 %v430, %v742
        %v744 = vrot.slane %v743, 4
        %v745 = vadd.f32 %v743, %v744
        %v746 = vrot.slane %v745, 2
        %v747 = vadd.f32 %v745, %v746
        %v748 = vrot.slane %v747, 1
        %v749 = vadd.f32 %v747, %v748
        %v750 = vsel %vm461, %v443, 0.0
        %v751 = vadd.f32 %v437, %v750
        %v752 = vrot.slane %v751, 4
        %v753 = vadd.f32 %v751, %v752
        %v754 = vrot.slane %v753, 2
        %v755 = vadd.f32 %v753, %v754
        %v756 = vrot.slane %v755, 1
        %v757 = vadd.f32 %v755, %v756
        %v758 = vsel %vm461, %v444, 0.0
        %v759 = vadd.f32 %v438, %v758
        %v760 = vrot.slane %v759, 4
        %v761 = vadd.f32 %v759, %v760
        %v762 = vrot.slane %v761, 2
        %v763 = vadd.f32 %v761, %v762
        %v764 = vrot.slane %v763, 1
        %v765 = vadd.f32 %v763, %v764
        %v766 = vsel %vm461, %v445, 0.0
        %v767 = vadd.f32 %v439, %v766
        %v768 = vrot.slane %v767, 4
        %v769 = vadd.f32 %v767, %v768
        %v770 = vrot.slane %v769, 2
        %v771 = vadd.f32 %v769, %v770
        %v772 = vrot.slane %v771, 1
        %v773 = vadd.f32 %v771, %v772
        %v774 = vsel %vm461, %v446, 0.0
        %v775 = vadd.f32 %v440, %v774
        %v776 = vrot.slane %v775, 4
        %v777 = vadd.f32 %v775, %v776
        %v778 = vrot.slane %v777, 2
        %v779 = vadd.f32 %v777, %v778
        %v780 = vrot.slane %v779, 1
        %v781 = vadd.f32 %v779, %v780
        %v782 = vsel %vm461, %v447, 0.0
        %v783 = vadd.f32 %v441, %v782
        %v784 = vrot.slane %v783, 4
        %v785 = vadd.f32 %v783, %v784
        %v786 = vrot.slane %v785, 2
        %v787 = vadd.f32 %v785, %v786
        %v788 = vrot.slane %v787, 1
        %v789 = vadd.f32 %v787, %v788
        %v790 = vsel %vm461, %v448, 0.0
        %v791 = vadd.f32 %v442, %v790
        %v792 = vrot.slane %v791, 4
        %v793 = vadd.f32 %v791, %v792
        %v794 = vrot.slane %v793, 2
        %v795 = vadd.f32 %v793, %v794
        %v796 = vrot.slane %v795, 1
        %v797 = vadd.f32 %v795, %v796
        %v798 = vsel %vm461, %v455, 0.0
        %v799 = vadd.f32 %v449, %v798
        %v800 = vrot.slane %v799, 4
        %v801 = vadd.f32 %v799, %v800
        %v802 = vrot.slane %v801, 2
        %v803 = vadd.f32 %v801, %v802
        %v804 = vrot.slane %v803, 1
        %v805 = vadd.f32 %v803, %v804
        %v806 = vsel %vm461, %v456, 0.0
        %v807 = vadd.f32 %v450, %v806
        %v808 = vrot.slane %v807, 4
        %v809 = vadd.f32 %v807, %v808
        %v810 = vrot.slane %v809, 2
        %v811 = vadd.f32 %v809, %v810
        %v812 = vrot.slane %v811, 1
        %v813 = vadd.f32 %v811, %v812
        %v814 = vsel %vm461, %v457, 0.0
        %v815 = vadd.f32 %v451, %v814
        %v816 = vrot.slane %v815, 4
        %v817 = vadd.f32 %v815, %v816
        %v818 = vrot.slane %v817, 2
        %v819 = vadd.f32 %v817, %v818
        %v820 = vrot.slane %v819, 1
        %v821 = vadd.f32 %v819, %v820
        %v822 = vsel %vm461, %v458, 0.0
        %v823 = vadd.f32 %v452, %v822
        %v824 = vrot.slane %v823, 4
        %v825 = vadd.f32 %v823, %v824
        %v826 = vrot.slane %v825, 2
        %v827 = vadd.f32 %v825, %v826
        %v828 = vrot.slane %v827, 1
        %v829 = vadd.f32 %v827, %v828
        %v830 = vsel %vm461, %v459, 0.0
        %v831 = vadd.f32 %v453, %v830
        %v832 = vrot.slane %v831, 4
        %v833 = vadd.f32 %v831, %v832
        %v834 = vrot.slane %v833, 2
        %v835 = vadd.f32 %v833, %v834
        %v836 = vrot.slane %v835, 1
        %v837 = vadd.f32 %v835, %v836
        %v838 = vsel %vm461, %v460, 0.0
        %v839 = vadd.f32 %v454, %v838
        %v840 = vrot.slane %v839, 4
        %v841 = vadd.f32 %v839, %v840
        %v842 = vrot.slane %v841, 2
        %v843 = vadd.f32 %v841, %v842
        %v844 = vrot.slane %v843, 1
        %v845 = vadd.f32 %v843, %v844
        %vm846 = vcmask 72704
        %v847 = vsel %vm846, %v260, 0.0
        %848 = vadd.xlane.f32.xlu0 %v847
        %v849 = vpop.xlane.xlu0 %848
        %v850 = vmax.f32 %v849, 1e-09
        %v851 = vrcp.pop %v850
        %v853 = vrot.slane %v851, 1
        %v854 = vrot.slane %v851, 2
        %v855 = vrot.slane %v851, 3
        %v856 = vrot.slane %v851, 4
        %v857 = vrot.slane %v851, 5
        %v858 = vrot.slane %v851, 6
        %v859 = vrot.slane %v851, 7
        %v868 = vmul.f32 %v469, %v851
        %v869 = vmul.f32 %v477, %v851
        %v870 = vmul.f32 %v485, %v851
        %v871 = vmul.f32 %v493, %v851
        %v872 = vmul.f32 %v501, %v851
        %v873 = vmul.f32 %v509, %v851
        %v874 = vmul.f32 %v517, %v853
        %v875 = vmul.f32 %v525, %v853
        %v876 = vmul.f32 %v533, %v853
        %v877 = vmul.f32 %v541, %v853
        %v878 = vmul.f32 %v549, %v853
        %v879 = vmul.f32 %v557, %v853
        %v880 = vmul.f32 %v565, %v854
        %v881 = vmul.f32 %v573, %v854
        %v882 = vmul.f32 %v581, %v854
        %v883 = vmul.f32 %v589, %v854
        %v884 = vmul.f32 %v597, %v854
        %v885 = vmul.f32 %v605, %v854
        %v886 = vmul.f32 %v613, %v855
        %v887 = vmul.f32 %v621, %v855
        %v888 = vmul.f32 %v629, %v855
        %v889 = vmul.f32 %v637, %v855
        %v890 = vmul.f32 %v645, %v855
        %v891 = vmul.f32 %v653, %v855
        %v892 = vmul.f32 %v661, %v856
        %v893 = vmul.f32 %v669, %v856
        %v894 = vmul.f32 %v677, %v856
        %v895 = vmul.f32 %v685, %v856
        %v896 = vmul.f32 %v693, %v856
        %v897 = vmul.f32 %v701, %v856
        %v898 = vmul.f32 %v709, %v857
        %v899 = vmul.f32 %v717, %v857
        %v900 = vmul.f32 %v725, %v857
        %v901 = vmul.f32 %v733, %v857
        %v902 = vmul.f32 %v741, %v857
        %v903 = vmul.f32 %v749, %v857
        %v904 = vmul.f32 %v757, %v858
        %v905 = vmul.f32 %v765, %v858
        %v906 = vmul.f32 %v773, %v858
        %v907 = vmul.f32 %v781, %v858
        %v908 = vmul.f32 %v789, %v858
        %v909 = vmul.f32 %v797, %v858
        %v910 = vmul.f32 %v805, %v859
        %v911 = vmul.f32 %v813, %v859
        %v912 = vmul.f32 %v821, %v859
        %v913 = vmul.f32 %v829, %v859
        %v914 = vmul.f32 %v837, %v859
        %v915 = vmul.f32 %v845, %v859
        %v964 = vrot.slane %v874, 7
        %vm965 = vcmask 1041409
        %v966 = vsel %vm965, %v964, %v868
        %v967 = vrot.slane %v880, 6
        %vm968 = vcmask 1042434
        %v969 = vsel %vm968, %v967, %v966
        %v970 = vrot.slane %v886, 5
        %vm971 = vcmask 1043459
        %v972 = vsel %vm971, %v970, %v969
        %v973 = vrot.slane %v892, 4
        %vm974 = vcmask 1044484
        %v975 = vsel %vm974, %v973, %v972
        %v976 = vrot.slane %v898, 3
        %vm977 = vcmask 1045509
        %v978 = vsel %vm977, %v976, %v975
        %v979 = vrot.slane %v904, 2
        %vm980 = vcmask 1046534
        %v981 = vsel %vm980, %v979, %v978
        %v982 = vrot.slane %v910, 1
        %vm983 = vcmask 1047559
        %v984 = vsel %vm983, %v982, %v981
        %v985 = vrot.slane %v875, 7
        %v986 = vsel %vm965, %v985, %v869
        %v987 = vrot.slane %v881, 6
        %v988 = vsel %vm968, %v987, %v986
        %v989 = vrot.slane %v887, 5
        %v990 = vsel %vm971, %v989, %v988
        %v991 = vrot.slane %v893, 4
        %v992 = vsel %vm974, %v991, %v990
        %v993 = vrot.slane %v899, 3
        %v994 = vsel %vm977, %v993, %v992
        %v995 = vrot.slane %v905, 2
        %v996 = vsel %vm980, %v995, %v994
        %v997 = vrot.slane %v911, 1
        %v998 = vsel %vm983, %v997, %v996
        %v999 = vrot.slane %v876, 7
        %v1000 = vsel %vm965, %v999, %v870
        %v1001 = vrot.slane %v882, 6
        %v1002 = vsel %vm968, %v1001, %v1000
        %v1003 = vrot.slane %v888, 5
        %v1004 = vsel %vm971, %v1003, %v1002
        %v1005 = vrot.slane %v894, 4
        %v1006 = vsel %vm974, %v1005, %v1004
        %v1007 = vrot.slane %v900, 3
        %v1008 = vsel %vm977, %v1007, %v1006
        %v1009 = vrot.slane %v906, 2
        %v1010 = vsel %vm980, %v1009, %v1008
        %v1011 = vrot.slane %v912, 1
        %v1012 = vsel %vm983, %v1011, %v1010
        %v1013 = vrot.slane %v877, 7
        %v1014 = vsel %vm965, %v1013, %v871
        %v1015 = vrot.slane %v883, 6
        %v1016 = vsel %vm968, %v1015, %v1014
        %v1017 = vrot.slane %v889, 5
        %v1018 = vsel %vm971, %v1017, %v1016
        %v1019 = vrot.slane %v895, 4
        %v1020 = vsel %vm974, %v1019, %v1018
        %v1021 = vrot.slane %v901, 3
        %v1022 = vsel %vm977, %v1021, %v1020
        %v1023 = vrot.slane %v907, 2
        %v1024 = vsel %vm980, %v1023, %v1022
        %v1025 = vrot.slane %v913, 1
        %v1026 = vsel %vm983, %v1025, %v1024
        %v1027 = vrot.slane %v878, 7
        %v1028 = vsel %vm965, %v1027, %v872
        %v1029 = vrot.slane %v884, 6
        %v1030 = vsel %vm968, %v1029, %v1028
        %v1031 = vrot.slane %v890, 5
        %v1032 = vsel %vm971, %v1031, %v1030
        %v1033 = vrot.slane %v896, 4
        %v1034 = vsel %vm974, %v1033, %v1032
        %v1035 = vrot.slane %v902, 3
        %v1036 = vsel %vm977, %v1035, %v1034
        %v1037 = vrot.slane %v908, 2
        %v1038 = vsel %vm980, %v1037, %v1036
        %v1039 = vrot.slane %v914, 1
        %v1040 = vsel %vm983, %v1039, %v1038
        %v1041 = vrot.slane %v879, 7
        %v1042 = vsel %vm965, %v1041, %v873
        %v1043 = vrot.slane %v885, 6
        %v1044 = vsel %vm968, %v1043, %v1042
        %v1045 = vrot.slane %v891, 5
        %v1046 = vsel %vm971, %v1045, %v1044
        %v1047 = vrot.slane %v897, 4
        %v1048 = vsel %vm974, %v1047, %v1046
        %v1049 = vrot.slane %v903, 3
        %v1050 = vsel %vm977, %v1049, %v1048
        %v1051 = vrot.slane %v909, 2
        %v1052 = vsel %vm980, %v1051, %v1050
        %v1053 = vrot.slane %v915, 1
        %v1054 = vsel %vm983, %v1053, %v1052
        %1061 = vst [vmem:[%s152] sm:$0xff] %v984
        %1062 = vst [vmem:[%s152 + $0x8] sm:$0xff] %v998
        %1063 = vst [vmem:[%s152 + $0x10] sm:$0xff] %v1012
        %1064 = vst [vmem:[%s152 + $0x18] sm:$0xff] %v1026
        %1065 = vst [vmem:[%s152 + $0x20] sm:$0xff] %v1040
        %1066 = vst [vmem:[%s152 + $0x28] sm:$0xff] %v1054
        %s1067 = sand.u32 %s76, 1
        %s1068 = scalar_lea.sflag [#allocation3], %s1067
        %s1069 = sand.u32 %s76, 1
        %s1070 = smul.addr %s1069, 48
        %s1071 = scalar_lea.vmem [#allocation2], %s1070
        // Predicated region
        $region29: #{tpu_custom_call.1} parent=27 // pred_check
          %p1072 = pneg %p86
        $region30: #{tpu_custom_call.1} parent=27 // pred_check_branch
          %1074 = sbr.rel (%p1072) target = $region32
        $region31: #{tpu_custom_call.1} parent=27 // pred_region
          %1076 = vsyncadd %s1068, 0
          %s1077 = smul.addr %s16, 6
          %s1078 = smul.addr %s1077, 8
          %s1079 = scalar_lea.hbm %s2, %s1078
          %s1081 = sshll.u32 %s1071, 4
          %s1082 = int_to_ptr.vmem [resolvable:$true] %s1081
          %s1083 = sshll.u32 %s1079, 4
          %s1084 = int_to_ptr.hbm [resolvable:$true] %s1083
          %1086 = dma.vmem_to_hbm [thread:$0]  %s1082, 768, %s1084, %s1068
        $region32: #{tpu_custom_call.1} parent=27 // pred_fallthru
          _
      $region28: #{tpu_custom_call.1} parent=5 // pred_fallthru
        _
      %p1087 = scmp.le.s32.totalorder 2, %s11
      // Predicated region
      $region33: #{tpu_custom_call.1} parent=5 // pred_check
        %p1088 = pneg %p1087
      $region34: #{tpu_custom_call.1} parent=5 // pred_check_branch
        %1090 = sbr.rel (%p1088) target = $region36
      $region35: #{tpu_custom_call.1} parent=5 // pred_region
        %s1091 = ssub.s32 %s11, 2
        // Predicated region
        $region37: #{tpu_custom_call.1} parent=35 // pred_check
          %p1092 = pneg %p92
        $region38: #{tpu_custom_call.1} parent=35 // pred_check_branch
          %1094 = sbr.rel (%p1092) target = $region40
        $region39: #{tpu_custom_call.1} parent=35 // pred_region
          %s1095 = sand.u32 %s77, 1
          %s1096 = scalar_lea.sflag [#allocation3], %s1095
          %s1097 = sand.u32 %s77, 1
          %s1098 = smul.addr %s1097, 48
          %s1099 = scalar_lea.vmem [#allocation2], %s1098
          %1101 = dma.done %s1096, 768
        $region40: #{tpu_custom_call.1} parent=35 // pred_fallthru
          _
      $region36: #{tpu_custom_call.1} parent=5 // pred_fallthru
        _
    $region6: #{tpu_custom_call.1} parent=1 // loop_footer
      %s15 = sadd.s32 1, %s11
    $region7: #{tpu_custom_call.1} parent=1 // loop_footer_branch
      %10 = sbr.rel target = $region3
    $region8: #{tpu_custom_call.1} parent=1 // loop_exit
      _
    %1102 = vsyncpa [#allocation3], 1
    %s1103 = scalar_lea.sflag [#allocation3], 1
    %1104 = vsyncpa %s1103, 1

</llo_original>
